<compile_context>
chip_gen: v6e
topology: v6e:2x2x1
jax: 0.10.0
libtpu: 0.0.40
codegen_flags: <defaults>
</compile_context>

<pallas_src>
import functools

import jax
import jax.numpy as jnp
from jax.experimental import pallas as pl
from jax.experimental.pallas import tpu as pltpu

PD = 128  # padded feature width: 6, 12, 7, 3 all fit in one 128-lane tile


def _mlp_kernel(x_ref, w1_ref, w2_ref, w3_ref, b_ref, o_ref):
    # Layer 1: Linear + ReLU  (bf16 MXU inputs, f32 accumulate, f32 epilogue)
    x = x_ref[...].astype(jnp.bfloat16)
    h1 = jnp.dot(x, w1_ref[...], preferred_element_type=jnp.float32)
    h1 = jnp.maximum(h1 + b_ref[0, :], 0.0)
    # Layer 2: Linear + ReLU
    h2 = jnp.dot(h1.astype(jnp.bfloat16), w2_ref[...],
                 preferred_element_type=jnp.float32)
    h2 = jnp.maximum(h2 + b_ref[1, :], 0.0)
    # Layer 3: Linear + Sigmoid (reciprocal on the EUP)
    z = jnp.dot(h2.astype(jnp.bfloat16), w3_ref[...],
                preferred_element_type=jnp.float32)
    z = z + b_ref[2, :]
    o_ref[...] = pl.reciprocal(1.0 + jnp.exp(-z), approx=True).astype(o_ref.dtype)


def _pad2d(a, rows, cols):
    r, c = a.shape
    return jnp.pad(a, ((0, rows - r), (0, cols - c)))


def prepare_params(params, compute_dtype=jnp.bfloat16):
    """Pad + cast parameters ONCE (outside the per-step hot loop).

    Weights (stored as (in_features, out_features)) are zero-padded to
    (128,128) and cast to `compute_dtype` for the MXU; the three biases are
    stacked into one (8,128) f32 buffer (rows 0,1,2)."""
    w1, b1 = params["input2hl"]
    w2, b2 = params["hl2hl"]
    w3, b3 = params["hl2output"]
    w1p = _pad2d(w1, PD, PD).astype(compute_dtype)
    w2p = _pad2d(w2, PD, PD).astype(compute_dtype)
    w3p = _pad2d(w3, PD, PD).astype(compute_dtype)
    bias = jnp.zeros((8, PD), jnp.float32)
    bias = bias.at[0, : b1.shape[0]].set(b1.astype(jnp.float32))
    bias = bias.at[1, : b2.shape[0]].set(b2.astype(jnp.float32))
    bias = bias.at[2, : b3.shape[0]].set(b3.astype(jnp.float32))
    return (w1p, w2p, w3p, bias)


def _forward_padded(x_padded, w1p, w2p, w3p, bias):
    """x_padded: (PB, 128) f32, PB a multiple of 8 (and of 128 when > 128).
    Returns the padded (PB, 128) sigmoid output (no slicing)."""
    PB = x_padded.shape[0]
    TB = PB if PB <= 128 else 128      # batch tile; weights stay resident
    grid = (PB // TB,)
    return pl.pallas_call(
        _mlp_kernel,
        out_shape=jax.ShapeDtypeStruct((PB, PD), jnp.float32),
        grid=grid,
        in_specs=[
            pl.BlockSpec((TB, PD), lambda i: (i, 0)),   # x: tiled over batch
            pl.BlockSpec((PD, PD), lambda i: (0, 0)),   # W1 (VMEM-resident)
            pl.BlockSpec((PD, PD), lambda i: (0, 0)),   # W2
            pl.BlockSpec((PD, PD), lambda i: (0, 0)),   # W3
            pl.BlockSpec((8, PD), lambda i: (0, 0)),    # stacked biases
        ],
        out_specs=pl.BlockSpec((TB, PD), lambda i: (i, 0)),
        compiler_params=pltpu.CompilerParams(
            dimension_semantics=("parallel",)),
    )(x_padded, w1p, w2p, w3p, bias)


@functools.partial(jax.jit, static_argnames=("d_out",))
def neural_network_forward(x, prepared, d_out):
    """Convenience wrapper: pads x, runs the kernel, slices valid outputs.

    For latency-critical rollout loops, keep x pre-padded to (PB,128) and call
    `_forward_padded` directly to skip the pad/slice HLOs around the kernel."""
    w1p, w2p, w3p, bias = prepared
    batch, _ = x.shape
    if batch <= 128:
        PB = max(8, -(-batch // 8) * 8)          # one (>=8)-row tile
    else:
        PB = -(-batch // 128) * 128              # 128-row tiles, gridded
    xp = _pad2d(x.astype(jnp.float32), PB, PD)
    out = _forward_padded(xp, w1p, w2p, w3p, bias)
    return out[:batch, :d_out]


def init_params(key, input_len, output_len):
    """Deterministic init matching nn.Linear shapes (weights transposed to
    (in, out) for the kernel's x @ W convention)."""
    dims = [
        (input_len, input_len * 2),      # input2hl
        (input_len * 2, input_len + 1),  # hl2hl
        (input_len + 1, output_len),     # hl2output
    ]
    names = ["input2hl", "hl2hl", "hl2output"]
    params = {}
    for name, (din, dout) in zip(names, dims):
        key, kw, kb = jax.random.split(key, 3)
        bound = 1.0 / (din ** 0.5)  # same scale as PyTorch's default Linear init
        w = jax.random.uniform(kw, (din, dout), jnp.float32, -bound, bound)
        b = jax.random.uniform(kb, (dout,), jnp.float32, -bound, bound)
        params[name] = (w, b)
    return params


def _reference(x, params):
    w1, b1 = params["input2hl"]
    w2, b2 = params["hl2hl"]
    w3, b3 = params["hl2output"]
    h = jnp.maximum(x @ w1 + b1, 0.0)
    h = jnp.maximum(h @ w2 + b2, 0.0)
    return jax.nn.sigmoid(h @ w3 + b3)


if __name__ == "__main__":
    # Acrobot-v1: observation dim 6, action dim 3.
    INPUT_LEN = 6
    OUTPUT_LEN = 3
    BATCH = 2

    key = jax.random.PRNGKey(0)
    key, kx, kxl = jax.random.split(key, 3)
    x = jax.random.normal(kx, (BATCH, INPUT_LEN), jnp.float32)
    params = init_params(key, INPUT_LEN, OUTPUT_LEN)

    # Pad/cast parameters once (outside the hot loop).
    prepared = prepare_params(params)

    # Small-batch path (single tile, grid=(1,)).
    out = neural_network_forward(x, prepared, OUTPUT_LEN)
    out = jax.block_until_ready(out)
    expected = _reference(x, params)
    assert out.shape == (BATCH, OUTPUT_LEN), out.shape
    # bf16 MXU inputs + approx reciprocal -> relaxed (but tight for sigmoid) tol.
    assert jnp.allclose(out, expected, atol=2e-2, rtol=2e-2), (
        float(jnp.max(jnp.abs(out - expected)))
    )

    # Batched (population) path: exercises the 128-row tiled grid.
    x_big = jax.random.normal(kxl, (256, INPUT_LEN), jnp.float32)
    out_big = jax.block_until_ready(
        neural_network_forward(x_big, prepared, OUTPUT_LEN))
    expected_big = _reference(x_big, params)
    assert out_big.shape == (256, OUTPUT_LEN), out_big.shape
    assert jnp.allclose(out_big, expected_big, atol=2e-2, rtol=2e-2), (
        float(jnp.max(jnp.abs(out_big - expected_big)))
    )

    print("KERNEL_OK")
</pallas_src>

<mosaic_0001>
module attributes {stable_mosaic.version = 11 : i64} {
  func.func @_mlp_kernel(%arg0: i32, %arg1: memref<8x128xf32, #tpu.memory_space<vmem>>, %arg2: memref<128x128xbf16, #tpu.memory_space<vmem>>, %arg3: memref<128x128xbf16, #tpu.memory_space<vmem>>, %arg4: memref<128x128xbf16, #tpu.memory_space<vmem>>, %arg5: memref<8x128xf32, #tpu.memory_space<vmem>>, %arg6: memref<8x128xf32, #tpu.memory_space<vmem>>) attributes {dimension_semantics = [#tpu.dimension_semantics<parallel>], iteration_bounds = array<i64: 1>, scalar_prefetch = 0 : i64, scratch_operands = 0 : i64, tpu.core_type = #tpu.core_type<tc>, window_params = [{transform_indices = @transform_0, window_bounds = array<i64: 8, 128>}, {pipeline_mode = #tpu.pipeline_mode<synchronous>, transform_indices = @transform_1, window_bounds = array<i64: 128, 128>}, {pipeline_mode = #tpu.pipeline_mode<synchronous>, transform_indices = @transform_2, window_bounds = array<i64: 128, 128>}, {pipeline_mode = #tpu.pipeline_mode<synchronous>, transform_indices = @transform_3, window_bounds = array<i64: 128, 128>}, {pipeline_mode = #tpu.pipeline_mode<synchronous>, transform_indices = @transform_4, window_bounds = array<i64: 8, 128>}, {transform_indices = @transform_5, window_bounds = array<i64: 8, 128>}]} {
    %c0 = arith.constant 0 : index
    %c0_0 = arith.constant 0 : index
    %0 = vector.load %arg1[%c0, %c0_0] : memref<8x128xf32, #tpu.memory_space<vmem>>, vector<8x128xf32>
    %1 = arith.truncf %0 : vector<8x128xf32> to vector<8x128xbf16>
    %c0_1 = arith.constant 0 : index
    %c0_2 = arith.constant 0 : index
    %2 = vector.load %arg2[%c0_1, %c0_2] : memref<128x128xbf16, #tpu.memory_space<vmem>>, vector<128x128xbf16>
    %cst = arith.constant dense<0.000000e+00> : vector<8x128xf32>
    %3 = tpu.matmul %1, %2, %cst {dimension_numbers = #tpu.dot_dimension_numbers<[1], [0], [0], [1], [0, 0, 1, 1], [], []>} : vector<8x128xbf16>, vector<128x128xbf16>, vector<8x128xf32> -> vector<8x128xf32>
    %c0_3 = arith.constant 0 : index
    %c0_4 = arith.constant 0 : index
    %4 = vector.load %arg5[%c0_3, %c0_4] : memref<8x128xf32, #tpu.memory_space<vmem>>, vector<1x128xf32>
    %5 = vector.shape_cast %4 : vector<1x128xf32> to vector<128xf32>
    %6 = vector.shape_cast %5 : vector<128xf32> to vector<1x128xf32>
    %7 = vector.broadcast %6 : vector<1x128xf32> to vector<8x128xf32>
    %8 = arith.addf %3, %7 : vector<8x128xf32>
    %cst_5 = arith.constant 0.000000e+00 : f32
    %9 = vector.broadcast %cst_5 : f32 to vector<8x128xf32>
    %10 = arith.maximumf %8, %9 : vector<8x128xf32>
    %11 = arith.truncf %10 : vector<8x128xf32> to vector<8x128xbf16>
    %c0_6 = arith.constant 0 : index
    %c0_7 = arith.constant 0 : index
    %12 = vector.load %arg3[%c0_6, %c0_7] : memref<128x128xbf16, #tpu.memory_space<vmem>>, vector<128x128xbf16>
    %cst_8 = arith.constant dense<0.000000e+00> : vector<8x128xf32>
    %13 = tpu.matmul %11, %12, %cst_8 {dimension_numbers = #tpu.dot_dimension_numbers<[1], [0], [0], [1], [0, 0, 1, 1], [], []>} : vector<8x128xbf16>, vector<128x128xbf16>, vector<8x128xf32> -> vector<8x128xf32>
    %c1 = arith.constant 1 : index
    %c0_9 = arith.constant 0 : index
    %14 = vector.load %arg5[%c1, %c0_9] : memref<8x128xf32, #tpu.memory_space<vmem>>, vector<1x128xf32>
    %15 = vector.shape_cast %14 : vector<1x128xf32> to vector<128xf32>
    %16 = vector.shape_cast %15 : vector<128xf32> to vector<1x128xf32>
    %17 = vector.broadcast %16 : vector<1x128xf32> to vector<8x128xf32>
    %18 = arith.addf %13, %17 : vector<8x128xf32>
    %cst_10 = arith.constant 0.000000e+00 : f32
    %19 = vector.broadcast %cst_10 : f32 to vector<8x128xf32>
    %20 = arith.maximumf %18, %19 : vector<8x128xf32>
    %21 = arith.truncf %20 : vector<8x128xf32> to vector<8x128xbf16>
    %c0_11 = arith.constant 0 : index
    %c0_12 = arith.constant 0 : index
    %22 = vector.load %arg4[%c0_11, %c0_12] : memref<128x128xbf16, #tpu.memory_space<vmem>>, vector<128x128xbf16>
    %cst_13 = arith.constant dense<0.000000e+00> : vector<8x128xf32>
    %23 = tpu.matmul %21, %22, %cst_13 {dimension_numbers = #tpu.dot_dimension_numbers<[1], [0], [0], [1], [0, 0, 1, 1], [], []>} : vector<8x128xbf16>, vector<128x128xbf16>, vector<8x128xf32> -> vector<8x128xf32>
    %c2 = arith.constant 2 : index
    %c0_14 = arith.constant 0 : index
    %24 = vector.load %arg5[%c2, %c0_14] : memref<8x128xf32, #tpu.memory_space<vmem>>, vector<1x128xf32>
    %25 = vector.shape_cast %24 : vector<1x128xf32> to vector<128xf32>
    %26 = vector.shape_cast %25 : vector<128xf32> to vector<1x128xf32>
    %27 = vector.broadcast %26 : vector<1x128xf32> to vector<8x128xf32>
    %28 = arith.addf %23, %27 : vector<8x128xf32>
    %cst_15 = arith.constant 0.000000e+00 : f32
    %29 = vector.broadcast %cst_15 : f32 to vector<8x128xf32>
    %30 = arith.subf %29, %28 : vector<8x128xf32>
    %31 = math.exp %30 : vector<8x128xf32>
    %cst_16 = arith.constant 1.000000e+00 : f32
    %32 = vector.broadcast %cst_16 : f32 to vector<8x128xf32>
    %33 = arith.addf %32, %31 : vector<8x128xf32>
    %34 = tpu.reciprocal %33 {approx = true} : vector<8x128xf32> -> vector<8x128xf32>
    %c0_17 = arith.constant 0 : index
    %c0_18 = arith.constant 0 : index
    %35 = vector.load %arg6[%c0_17, %c0_18] : memref<8x128xf32, #tpu.memory_space<vmem>>, vector<8x128xf32>
    tpu.vector_store %arg6[%c0_17, %c0_18], %34 {strides = array<i32>} : memref<8x128xf32, #tpu.memory_space<vmem>>, vector<8x128xf32>,
    return
  }
  func.func @transform_0(%arg0: i32) -> (i32, i32) {
    %c0_i32 = arith.constant 0 : i32
    %c0_i32_0 = arith.constant 0 : i32
    return %arg0, %c0_i32 : i32, i32
  }
  func.func @transform_1(%arg0: i32) -> (i32, i32) {
    %c0_i32 = arith.constant 0 : i32
    %c0_i32_0 = arith.constant 0 : i32
    %c0_i32_1 = arith.constant 0 : i32
    return %c0_i32, %c0_i32_0 : i32, i32
  }
  func.func @transform_2(%arg0: i32) -> (i32, i32) {
    %c0_i32 = arith.constant 0 : i32
    %c0_i32_0 = arith.constant 0 : i32
    %c0_i32_1 = arith.constant 0 : i32
    return %c0_i32, %c0_i32_0 : i32, i32
  }
  func.func @transform_3(%arg0: i32) -> (i32, i32) {
    %c0_i32 = arith.constant 0 : i32
    %c0_i32_0 = arith.constant 0 : i32
    %c0_i32_1 = arith.constant 0 : i32
    return %c0_i32, %c0_i32_0 : i32, i32
  }
  func.func @transform_4(%arg0: i32) -> (i32, i32) {
    %c0_i32 = arith.constant 0 : i32
    %c0_i32_0 = arith.constant 0 : i32
    %c0_i32_1 = arith.constant 0 : i32
    return %c0_i32, %c0_i32_0 : i32, i32
  }
  func.func @transform_5(%arg0: i32) -> (i32, i32) {
    %c0_i32 = arith.constant 0 : i32
    %c0_i32_0 = arith.constant 0 : i32
    return %arg0, %c0_i32 : i32, i32
  }
}

</mosaic_0001>

<llo_original>
// kernel: neural_network_forward.1
$region0: #{neural_network_forward.1}
  #allocation0 [shape = 'u32[]', space=smem, size = 0x4, offset = 0x4, fixed_abs, tag = 'smem constant byte address 0x4 - core index']
  #allocation1 [shape = 'u32[144,128]{1,0:T(1,128)}', space=vmem, size = 0x12000, scoped, tag = 'internal scratch']
  %s0 = inlined_call_operand.vmem [shape: f32[8,128], index: 0, kind: input, shape index: {}]
  %s1 = inlined_call_operand.hbm [shape: bf16[128,128], index: 1, kind: input, shape index: {}]
  %s2 = inlined_call_operand.hbm [shape: bf16[128,128], index: 2, kind: input, shape index: {}]
  %s3 = inlined_call_operand.hbm [shape: bf16[128,128], index: 3, kind: input, shape index: {}]
  %s4 = inlined_call_operand.vmem [shape: f32[8,128], index: 4, kind: input, shape index: {}]
  %s5 = inlined_call_operand.vmem [shape: f32[8,128], index: 5, kind: output, shape index: {}]
  %s6 = sld [smem:[#allocation0]]
  $region42: #{neural_network_forward.1} parent=0
    _
  %s8 = ssub.s32 1, %s6
  %s9 = scalar_select 0, %s8, %s6
  $region1: #{neural_network_forward.1} parent=0
    #allocation2 [shape = 'u8[32768]{0}', space=vmem, size = 0x8000, scoped, tag = 'input window, operand 1, single buffered']
    #allocation3 [shape = 's32[1]{0}', space=sflag, size = 0x4, scoped, tag = 'scoped memory for neural_network_forward.1']
    #allocation4 [shape = 'u8[32768]{0}', space=vmem, size = 0x8000, scoped, tag = 'input window, operand 2, single buffered']
    #allocation5 [shape = 's32[1]{0}', space=sflag, size = 0x4, scoped, tag = 'scoped memory for neural_network_forward.1']
    #allocation6 [shape = 'u8[32768]{0}', space=vmem, size = 0x8000, scoped, tag = 'input window, operand 3, single buffered']
    %10 = vsyncpa [#allocation3], 0
    %11 = vsyncpa [#allocation5], 0
    // Predicated region
    $region2: #{neural_network_forward.1} parent=1 // pred_check
      _
    $region3: #{neural_network_forward.1} parent=1 // pred_check_branch
      %13 = sbr.rel (0) target = $region5
    $region4: #{neural_network_forward.1} parent=1 // pred_region
      _
    $region5: #{neural_network_forward.1} parent=1 // pred_fallthru
      _
    // Predicated region
    $region6: #{neural_network_forward.1} parent=1 // pred_check
      _
    $region7: #{neural_network_forward.1} parent=1 // pred_check_branch
      %15 = sbr.rel (0) target = $region9
    $region8: #{neural_network_forward.1} parent=1 // pred_region
      %s17 = ssub.s32 1024, 1024
      %18 = vsyncadd [#allocation3], %s17
      %s19 = sshll.u32 [#allocation2], 4
      %s20 = int_to_ptr.vmem [resolvable:$true] %s19
      %25 = dma.hbm_to_vmem [thread:$0]  %s1, 1024, %s20, [#allocation3], 64, 64, 4
    $region9: #{neural_network_forward.1} parent=1 // pred_fallthru
      _
    // Predicated region
    $region10: #{neural_network_forward.1} parent=1 // pred_check
      _
    $region11: #{neural_network_forward.1} parent=1 // pred_check_branch
      %27 = sbr.rel (0) target = $region13
    $region12: #{neural_network_forward.1} parent=1 // pred_region
      %s29 = ssub.s32 1024, 1024
      %30 = vsyncadd [#allocation5], %s29
      %s31 = sshll.u32 [#allocation4], 4
      %s32 = int_to_ptr.vmem [resolvable:$true] %s31
      %37 = dma.hbm_to_vmem [thread:$0]  %s2, 1024, %s32, [#allocation5], 64, 64, 4
    $region13: #{neural_network_forward.1} parent=1 // pred_fallthru
      _
    // Predicated region
    $region14: #{neural_network_forward.1} parent=1 // pred_check
      _
    $region15: #{neural_network_forward.1} parent=1 // pred_check_branch
      %39 = sbr.rel (0) target = $region17
    $region16: #{neural_network_forward.1} parent=1 // pred_region
      %s41 = ssub.s32 1024, 1024
      %42 = vsyncadd [#allocation5], %s41
      %s43 = sshll.u32 [#allocation6], 4
      %s44 = int_to_ptr.vmem [resolvable:$true] %s43
      %49 = dma.hbm_to_vmem [thread:$0]  %s3, 1024, %s44, [#allocation5], 64, 64, 4
    $region17: #{neural_network_forward.1} parent=1 // pred_fallthru
      _
    // Predicated region
    $region18: #{neural_network_forward.1} parent=1 // pred_check
      _
    $region19: #{neural_network_forward.1} parent=1 // pred_check_branch
      %51 = sbr.rel (0) target = $region21
    $region20: #{neural_network_forward.1} parent=1 // pred_region
      _
    $region21: #{neural_network_forward.1} parent=1 // pred_fallthru
      _
    // Predicated region
    $region22: #{neural_network_forward.1} parent=1 // pred_check
      _
    $region23: #{neural_network_forward.1} parent=1 // pred_check_branch
      %53 = sbr.rel (0) target = $region25
    $region24: #{neural_network_forward.1} parent=1 // pred_region
      %54 = dma.done [#allocation3], 1024
    $region25: #{neural_network_forward.1} parent=1 // pred_fallthru
      _
    // Predicated region
    $region26: #{neural_network_forward.1} parent=1 // pred_check
      _
    $region27: #{neural_network_forward.1} parent=1 // pred_check_branch
      %56 = sbr.rel (0) target = $region29
    $region28: #{neural_network_forward.1} parent=1 // pred_region
      %57 = dma.done [#allocation5], 1024
    $region29: #{neural_network_forward.1} parent=1 // pred_fallthru
      _
    // Predicated region
    $region30: #{neural_network_forward.1} parent=1 // pred_check
      _
    $region31: #{neural_network_forward.1} parent=1 // pred_check_branch
      %59 = sbr.rel (0) target = $region33
    $region32: #{neural_network_forward.1} parent=1 // pred_region
      %60 = dma.done [#allocation5], 1024
    $region33: #{neural_network_forward.1} parent=1 // pred_fallthru
      _
    %v62 = vld [vmem:[%s0] sm:$0xff]
    %v63 = vpack.c.bf16 %v62, %v62
    %v64 = vld [vmem:[#allocation2] sm:$0xf]
    %v65 = vld [vmem:[#allocation2 + $0x4] sm:$0xf]
    %v66 = vld [vmem:[#allocation2 + $0x8] sm:$0xf]
    %v67 = vld [vmem:[#allocation2 + $0xc] sm:$0xf]
    %v68 = vld [vmem:[#allocation2 + $0x10] sm:$0xf]
    %v69 = vld [vmem:[#allocation2 + $0x14] sm:$0xf]
    %v70 = vld [vmem:[#allocation2 + $0x18] sm:$0xf]
    %v71 = vld [vmem:[#allocation2 + $0x1c] sm:$0xf]
    %v72 = vld [vmem:[#allocation2 + $0x20] sm:$0xf]
    %v73 = vld [vmem:[#allocation2 + $0x24] sm:$0xf]
    %v74 = vld [vmem:[#allocation2 + $0x28] sm:$0xf]
    %v75 = vld [vmem:[#allocation2 + $0x2c] sm:$0xf]
    %v76 = vld [vmem:[#allocation2 + $0x30] sm:$0xf]
    %v77 = vld [vmem:[#allocation2 + $0x34] sm:$0xf]
    %v78 = vld [vmem:[#allocation2 + $0x38] sm:$0xf]
    %v79 = vld [vmem:[#allocation2 + $0x3c] sm:$0xf]
    %v80 = vld [vmem:[%s4] sm:$0x1]
    %v81 = vlaneseq
    %v82 = vshrl.u32 %v81, 7
    %v83 = vsub.s32 0, %v82
    %v84 = vrot.slane %v80, %v83
    %v101 = vunpack.c.l.b16 %v64
    %v102 = vunpack.c.l.b16 %v65
    %v103 = vunpack.c.l.b16 %v66
    %v104 = vunpack.c.l.b16 %v67
    %v105 = vunpack.c.l.b16 %v68
    %v106 = vunpack.c.l.b16 %v69
    %v107 = vunpack.c.l.b16 %v70
    %v108 = vunpack.c.l.b16 %v71
    %v109 = vunpack.c.l.b16 %v72
    %v110 = vunpack.c.l.b16 %v73
    %v111 = vunpack.c.l.b16 %v74
    %v112 = vunpack.c.l.b16 %v75
    %v113 = vunpack.c.l.b16 %v76
    %v114 = vunpack.c.l.b16 %v77
    %v115 = vunpack.c.l.b16 %v78
    %v116 = vunpack.c.l.b16 %v79
    %v117 = vpack.c.b16 %v102, %v101
    %v118 = vpack.c.b16 %v104, %v103
    %v119 = vpack.c.b16 %v106, %v105
    %v120 = vpack.c.b16 %v108, %v107
    %v121 = vpack.c.b16 %v110, %v109
    %v122 = vpack.c.b16 %v112, %v111
    %v123 = vpack.c.b16 %v114, %v113
    %v124 = vpack.c.b16 %v116, %v115
    %133 = vmatprep.subr.bf16.mxu0 0
    %134 = vmatpush1.bf16.msra.mxu0 %v124
    %135 = vmatprep.subr.bf16.mxu0 0
    %136 = vmatpush1.bf16.msra.mxu0 %v123
    %137 = vmatprep.subr.bf16.mxu0 0
    %138 = vmatpush1.bf16.msra.mxu0 %v122
    %139 = vmatprep.subr.bf16.mxu0 0
    %140 = vmatpush1.bf16.msra.mxu0 %v121
    %141 = vmatprep.subr.bf16.mxu0 0
    %142 = vmatpush1.bf16.msra.mxu0 %v120
    %143 = vmatprep.subr.bf16.mxu0 0
    %144 = vmatpush1.bf16.msra.mxu0 %v119
    %145 = vmatprep.subr.bf16.mxu0 0
    %146 = vmatpush1.bf16.msra.mxu0 %v118
    %147 = vmatprep.subr.bf16.mxu0 0
    %148 = vmatpush1.bf16.msra.mxu0 %v117
    %149 = vmatprep.subr.bf16.mxu0 0
    %150 = vmatpush2.bf16.msra.mxu0 0
    %151 = vmatprep.subr.bf16.mxu0 0
    %152 = vmatpush2.bf16.msra.mxu0 0
    %153 = vmatprep.subr.bf16.mxu0 0
    %154 = vmatpush2.bf16.msra.mxu0 0
    %155 = vmatprep.subr.bf16.mxu0 0
    %156 = vmatpush2.bf16.msra.mxu0 0
    %157 = vmatprep.subr.bf16.mxu0 0
    %158 = vmatpush2.bf16.msra.mxu0 0
    %159 = vmatprep.subr.bf16.mxu0 0
    %160 = vmatpush2.bf16.msra.mxu0 0
    %161 = vmatprep.subr.bf16.mxu0 0
    %162 = vmatpush2.bf16.msra.mxu0 0
    %163 = vmatprep.subr.bf16.mxu0 0
    %164 = vmatpush2.bf16.msra.mxu0 0
    %165 = vmatprep.mubr.bf16.mxu0 0
    %166 = vmatmul.mubr.bf16.gmra.mxu0 %v63
    %v167 = vpop.f32.mrf.mxu0
    %v168 = vadd.f32 %v84, %v167
    %v169 = vpop.f32.mrf.mxu0
    %v170 = vpop.f32.mrf.mxu0
    %v171 = vpop.f32.mrf.mxu0
    %172 = vdwg.mxu0
    %v173 = vmax.f32 %v168, 0.0
    %v174 = vpack.c.bf16 %v173, %v173
    %v175 = vld [vmem:[#allocation4] sm:$0xf]
    %v176 = vld [vmem:[#allocation4 + $0x4] sm:$0xf]
    %v177 = vld [vmem:[#allocation4 + $0x8] sm:$0xf]
    %v178 = vld [vmem:[#allocation4 + $0xc] sm:$0xf]
    %v179 = vld [vmem:[#allocation4 + $0x10] sm:$0xf]
    %v180 = vld [vmem:[#allocation4 + $0x14] sm:$0xf]
    %v181 = vld [vmem:[#allocation4 + $0x18] sm:$0xf]
    %v182 = vld [vmem:[#allocation4 + $0x1c] sm:$0xf]
    %v183 = vld [vmem:[#allocation4 + $0x20] sm:$0xf]
    %v184 = vld [vmem:[#allocation4 + $0x24] sm:$0xf]
    %v185 = vld [vmem:[#allocation4 + $0x28] sm:$0xf]
    %v186 = vld [vmem:[#allocation4 + $0x2c] sm:$0xf]
    %v187 = vld [vmem:[#allocation4 + $0x30] sm:$0xf]
    %v188 = vld [vmem:[#allocation4 + $0x34] sm:$0xf]
    %v189 = vld [vmem:[#allocation4 + $0x38] sm:$0xf]
    %v190 = vld [vmem:[#allocation4 + $0x3c] sm:$0xf]
    %v191 = vld [vmem:[%s4 + $0x1] sm:$0x1]
    %v192 = vlaneseq
    %v193 = vshrl.u32 %v192, 7
    %v194 = vsub.s32 0, %v193
    %v195 = vrot.slane %v191, %v194
    %v212 = vunpack.c.l.b16 %v175
    %v213 = vunpack.c.l.b16 %v176
    %v214 = vunpack.c.l.b16 %v177
    %v215 = vunpack.c.l.b16 %v178
    %v216 = vunpack.c.l.b16 %v179
    %v217 = vunpack.c.l.b16 %v180
    %v218 = vunpack.c.l.b16 %v181
    %v219 = vunpack.c.l.b16 %v182
    %v220 = vunpack.c.l.b16 %v183
    %v221 = vunpack.c.l.b16 %v184
    %v222 = vunpack.c.l.b16 %v185
    %v223 = vunpack.c.l.b16 %v186
    %v224 = vunpack.c.l.b16 %v187
    %v225 = vunpack.c.l.b16 %v188
    %v226 = vunpack.c.l.b16 %v189
    %v227 = vunpack.c.l.b16 %v190
    %v228 = vpack.c.b16 %v213, %v212
    %v229 = vpack.c.b16 %v215, %v214
    %v230 = vpack.c.b16 %v217, %v216
    %v231 = vpack.c.b16 %v219, %v218
    %v232 = vpack.c.b16 %v221, %v220
    %v233 = vpack.c.b16 %v223, %v222
    %v234 = vpack.c.b16 %v225, %v224
    %v235 = vpack.c.b16 %v227, %v226
    %244 = vmatprep.subr.bf16.mxu0 0
    %245 = vmatpush1.bf16.msra.mxu0 %v235
    %246 = vmatprep.subr.bf16.mxu0 0
    %247 = vmatpush1.bf16.msra.mxu0 %v234
    %248 = vmatprep.subr.bf16.mxu0 0
    %249 = vmatpush1.bf16.msra.mxu0 %v233
    %250 = vmatprep.subr.bf16.mxu0 0
    %251 = vmatpush1.bf16.msra.mxu0 %v232
    %252 = vmatprep.subr.bf16.mxu0 0
    %253 = vmatpush1.bf16.msra.mxu0 %v231
    %254 = vmatprep.subr.bf16.mxu0 0
    %255 = vmatpush1.bf16.msra.mxu0 %v230
    %256 = vmatprep.subr.bf16.mxu0 0
    %257 = vmatpush1.bf16.msra.mxu0 %v229
    %258 = vmatprep.subr.bf16.mxu0 0
    %259 = vmatpush1.bf16.msra.mxu0 %v228
    %260 = vmatprep.subr.bf16.mxu0 0
    %261 = vmatpush2.bf16.msra.mxu0 0
    %262 = vmatprep.subr.bf16.mxu0 0
    %263 = vmatpush2.bf16.msra.mxu0 0
    %264 = vmatprep.subr.bf16.mxu0 0
    %265 = vmatpush2.bf16.msra.mxu0 0
    %266 = vmatprep.subr.bf16.mxu0 0
    %267 = vmatpush2.bf16.msra.mxu0 0
    %268 = vmatprep.subr.bf16.mxu0 0
    %269 = vmatpush2.bf16.msra.mxu0 0
    %270 = vmatprep.subr.bf16.mxu0 0
    %271 = vmatpush2.bf16.msra.mxu0 0
    %272 = vmatprep.subr.bf16.mxu0 0
    %273 = vmatpush2.bf16.msra.mxu0 0
    %274 = vmatprep.subr.bf16.mxu0 0
    %275 = vmatpush2.bf16.msra.mxu0 0
    %276 = vmatprep.mubr.bf16.mxu0 0
    %277 = vmatmul.mubr.bf16.gmra.mxu0 %v174
    %v278 = vpop.f32.mrf.mxu0
    %v279 = vadd.f32 %v195, %v278
    %v280 = vpop.f32.mrf.mxu0
    %v281 = vpop.f32.mrf.mxu0
    %v282 = vpop.f32.mrf.mxu0
    %283 = vdwg.mxu0
    %v284 = vmax.f32 %v279, 0.0
    %v285 = vpack.c.bf16 %v284, %v284
    %v286 = vld [vmem:[#allocation6] sm:$0xf]
    %v287 = vld [vmem:[#allocation6 + $0x4] sm:$0xf]
    %v288 = vld [vmem:[#allocation6 + $0x8] sm:$0xf]
    %v289 = vld [vmem:[#allocation6 + $0xc] sm:$0xf]
    %v290 = vld [vmem:[#allocation6 + $0x10] sm:$0xf]
    %v291 = vld [vmem:[#allocation6 + $0x14] sm:$0xf]
    %v292 = vld [vmem:[#allocation6 + $0x18] sm:$0xf]
    %v293 = vld [vmem:[#allocation6 + $0x1c] sm:$0xf]
    %v294 = vld [vmem:[#allocation6 + $0x20] sm:$0xf]
    %v295 = vld [vmem:[#allocation6 + $0x24] sm:$0xf]
    %v296 = vld [vmem:[#allocation6 + $0x28] sm:$0xf]
    %v297 = vld [vmem:[#allocation6 + $0x2c] sm:$0xf]
    %v298 = vld [vmem:[#allocation6 + $0x30] sm:$0xf]
    %v299 = vld [vmem:[#allocation6 + $0x34] sm:$0xf]
    %v300 = vld [vmem:[#allocation6 + $0x38] sm:$0xf]
    %v301 = vld [vmem:[#allocation6 + $0x3c] sm:$0xf]
    %v302 = vld [vmem:[%s4 + $0x2] sm:$0x1]
    %v303 = vlaneseq
    %v304 = vshrl.u32 %v303, 7
    %v305 = vsub.s32 0, %v304
    %v306 = vrot.slane %v302, %v305
    %v323 = vunpack.c.l.b16 %v286
    %v324 = vunpack.c.l.b16 %v287
    %v325 = vunpack.c.l.b16 %v288
    %v326 = vunpack.c.l.b16 %v289
    %v327 = vunpack.c.l.b16 %v290
    %v328 = vunpack.c.l.b16 %v291
    %v329 = vunpack.c.l.b16 %v292
    %v330 = vunpack.c.l.b16 %v293
    %v331 = vunpack.c.l.b16 %v294
    %v332 = vunpack.c.l.b16 %v295
    %v333 = vunpack.c.l.b16 %v296
    %v334 = vunpack.c.l.b16 %v297
    %v335 = vunpack.c.l.b16 %v298
    %v336 = vunpack.c.l.b16 %v299
    %v337 = vunpack.c.l.b16 %v300
    %v338 = vunpack.c.l.b16 %v301
    %v339 = vpack.c.b16 %v324, %v323
    %v340 = vpack.c.b16 %v326, %v325
    %v341 = vpack.c.b16 %v328, %v327
    %v342 = vpack.c.b16 %v330, %v329
    %v343 = vpack.c.b16 %v332, %v331
    %v344 = vpack.c.b16 %v334, %v333
    %v345 = vpack.c.b16 %v336, %v335
    %v346 = vpack.c.b16 %v338, %v337
    %355 = vmatprep.subr.bf16.mxu0 0
    %356 = vmatpush1.bf16.msra.mxu0 %v346
    %357 = vmatprep.subr.bf16.mxu0 0
    %358 = vmatpush1.bf16.msra.mxu0 %v345
    %359 = vmatprep.subr.bf16.mxu0 0
    %360 = vmatpush1.bf16.msra.mxu0 %v344
    %361 = vmatprep.subr.bf16.mxu0 0
    %362 = vmatpush1.bf16.msra.mxu0 %v343
    %363 = vmatprep.subr.bf16.mxu0 0
    %364 = vmatpush1.bf16.msra.mxu0 %v342
    %365 = vmatprep.subr.bf16.mxu0 0
    %366 = vmatpush1.bf16.msra.mxu0 %v341
    %367 = vmatprep.subr.bf16.mxu0 0
    %368 = vmatpush1.bf16.msra.mxu0 %v340
    %369 = vmatprep.subr.bf16.mxu0 0
    %370 = vmatpush1.bf16.msra.mxu0 %v339
    %371 = vmatprep.subr.bf16.mxu0 0
    %372 = vmatpush2.bf16.msra.mxu0 0
    %373 = vmatprep.subr.bf16.mxu0 0
    %374 = vmatpush2.bf16.msra.mxu0 0
    %375 = vmatprep.subr.bf16.mxu0 0
    %376 = vmatpush2.bf16.msra.mxu0 0
    %377 = vmatprep.subr.bf16.mxu0 0
    %378 = vmatpush2.bf16.msra.mxu0 0
    %379 = vmatprep.subr.bf16.mxu0 0
    %380 = vmatpush2.bf16.msra.mxu0 0
    %381 = vmatprep.subr.bf16.mxu0 0
    %382 = vmatpush2.bf16.msra.mxu0 0
    %383 = vmatprep.subr.bf16.mxu0 0
    %384 = vmatpush2.bf16.msra.mxu0 0
    %385 = vmatprep.subr.bf16.mxu0 0
    %386 = vmatpush2.bf16.msra.mxu0 0
    %387 = vmatprep.mubr.bf16.mxu0 0
    %388 = vmatmul.mubr.bf16.gmra.mxu0 %v285
    %v389 = vpop.f32.mrf.mxu0
    %v390 = vadd.f32 %v306, %v389
    %v391 = vpop.f32.mrf.mxu0
    %v392 = vpop.f32.mrf.mxu0
    %v393 = vpop.f32.mrf.mxu0
    %394 = vdwg.mxu0
    %v395 = vsub.f32 0.0, %v390
    %v396 = vmul.f32 %v395, 1.442695
    %v397 = vpow.pop %v396
    %v398 = vadd.f32 %v397, 1.0
    %v399 = vrcp.pop %v398
    %400 = vst [vmem:[%s5] sm:$0xff] %v399
    // Predicated region
    $region34: #{neural_network_forward.1} parent=1 // pred_check
      _
    $region35: #{neural_network_forward.1} parent=1 // pred_check_branch
      %402 = sbr.rel (0) target = $region37
    $region36: #{neural_network_forward.1} parent=1 // pred_region
      _
    $region37: #{neural_network_forward.1} parent=1 // pred_fallthru
      _
    // Predicated region
    $region38: #{neural_network_forward.1} parent=1 // pred_check
      _
    $region39: #{neural_network_forward.1} parent=1 // pred_check_branch
      %404 = sbr.rel (0) target = $region41
    $region40: #{neural_network_forward.1} parent=1 // pred_region
      _
    $region41: #{neural_network_forward.1} parent=1 // pred_fallthru
      _
    %405 = vsyncpa [#allocation3], 1
    %406 = vsyncpa [#allocation5], 1

</llo_original>
